<compile_context>
chip_gen: v7x
topology: tpu7x:2x2x1
jax: 0.10.0
libtpu: 0.0.40
codegen_flags: <defaults>
</compile_context>

<pallas_src>
import functools

import jax
import jax.numpy as jnp
from jax.experimental import pallas as pl
from jax.experimental.pallas import tpu as pltpu

OUT_DIM = 2000   # fixed by the PyTorch module
TM_MAX = 512     # row-tile cap (see header note on VMEM budget)


def _cdiv(a, b):
    return -(-a // b)


def _round_up(x, m):
    return _cdiv(x, m) * m


def _decoder_kernel(x_ref, w1_ref, b1_ref, w2_ref, b2_ref, w3_ref, b3_ref, o_ref):
    x = x_ref[...]
    h1 = jnp.dot(x, w1_ref[...], preferred_element_type=jnp.float32) + b1_ref[...]
    h1 = jnp.maximum(h1, 0.0)
    h2 = jnp.dot(h1, w2_ref[...], preferred_element_type=jnp.float32) + b2_ref[...]
    h2 = jnp.maximum(h2, 0.0)
    # relu(relu(x)) == relu(x): the duplicated ReLU in the Sequential is a no-op
    out = jnp.dot(h2, w3_ref[...], preferred_element_type=jnp.float32) + b3_ref[...]
    o_ref[...] = out.astype(o_ref.dtype)


@functools.partial(jax.jit, static_argnames=("tm",))
def _decoder_mlp_padded(x2d, w1, b1, w2, b2, w3, b3, *, tm):
    """x2d: (N, hidden_dim) with N a multiple of tm (tm a multiple of 8)."""
    n, d = x2d.shape
    d2 = w1.shape[1]
    grid = (n // tm,)

    full = lambda shape: pl.BlockSpec(shape, lambda i: (0,) * len(shape))

    itemsize = jnp.dtype(x2d.dtype).itemsize
    flops = 2 * n * (d * d2 + d2 * d2 + d2 * OUT_DIM) + 2 * n * d2  # matmuls + bias/relu
    bytes_accessed = (
        n * (d + OUT_DIM) * itemsize
        + (d * d2 + d2 + d2 * d2 + d2 + d2 * OUT_DIM + OUT_DIM) * itemsize
    )

    return pl.pallas_call(
        _decoder_kernel,
        out_shape=jax.ShapeDtypeStruct((n, OUT_DIM), x2d.dtype),
        grid_spec=pltpu.PrefetchScalarGridSpec(
            num_scalar_prefetch=0,
            grid=grid,
            in_specs=[
                pl.BlockSpec((tm, d), lambda i: (i, 0)),   # x tile (pipelined)
                full((d, d2)),                              # W1 (grid-invariant)
                full((1, d2)),                              # b1
                full((d2, d2)),                             # W2
                full((1, d2)),                              # b2
                full((d2, OUT_DIM)),                        # W3
                full((1, OUT_DIM)),                         # b3
            ],
            # whole OUT_DIM as lane extent -> lane-dense (mostly unmasked) stores
            out_specs=pl.BlockSpec((tm, OUT_DIM), lambda i: (i, 0)),
        ),
        compiler_params=pltpu.CompilerParams(
            dimension_semantics=("parallel",),
            vmem_limit_bytes=48 * 1024 * 1024,
        ),
        cost_estimate=pl.CostEstimate(
            flops=flops, transcendentals=0, bytes_accessed=bytes_accessed),
    )(x2d, w1, b1, w2, b2, w3, b3)


def decoder_mlp(x2d, w1, b1, w2, b2, w3, b3, *, tm_max=TM_MAX):
    """Row-wise 3-layer MLP; handles arbitrary row counts via zero-padding.

    Tile chosen adaptively: num_tiles = ceil(N / tm_max), tile =
    round_up(N / num_tiles, 8). Keeps padding waste < 8 rows per tile and
    gives >=2 grid steps (megacore-shardable) whenever N > tm_max.
    """
    n, d = x2d.shape
    num_tiles = _cdiv(max(n, 1), tm_max)
    tm = max(8, _round_up(_cdiv(max(n, 1), num_tiles), 8))
    n_pad = tm * num_tiles
    if n_pad != n:
        x2d = jnp.pad(x2d, ((0, n_pad - n), (0, 0)))
    y = _decoder_mlp_padded(x2d, w1, b1, w2, b2, w3, b3, tm=tm)
    return y[:n] if n_pad != n else y


def decoder_forward(h_sc, h_st, params):
    """Replicates Decoder.forward: same MLP on both inputs, one fused kernel call."""
    w1, b1, w2, b2, w3, b3 = params
    bsz_sc, sc_num, dim = h_sc.shape
    bsz_st, st_num, _ = h_st.shape
    n_sc = bsz_sc * sc_num
    n_st = bsz_st * st_num

    x = jnp.concatenate(
        [h_sc.reshape(n_sc, dim), h_st.reshape(n_st, dim)], axis=0)
    y = decoder_mlp(x, w1, b1, w2, b2, w3, b3)

    out_sc = y[:n_sc].reshape(bsz_sc, sc_num, OUT_DIM)
    out_st = y[n_sc:].reshape(bsz_st, st_num, OUT_DIM)
    return out_sc, out_st


def init_params(key, hidden_dim, dtype=jnp.float32):
    """Deterministic init mimicking nn.Linear (uniform(-1/sqrt(fan_in), ...)).
    Weights stored as (in_features, out_features)."""
    d, d2 = hidden_dim, 2 * hidden_dim
    keys = jax.random.split(key, 6)

    def lin(kw, kb, fan_in, fan_out):
        bound = 1.0 / jnp.sqrt(fan_in)
        w = jax.random.uniform(kw, (fan_in, fan_out), dtype, -bound, bound)
        b = jax.random.uniform(kb, (1, fan_out), dtype, -bound, bound)
        return w, b

    w1, b1 = lin(keys[0], keys[1], d, d2)
    w2, b2 = lin(keys[2], keys[3], d2, d2)
    w3, b3 = lin(keys[4], keys[5], d2, OUT_DIM)
    return (w1, b1, w2, b2, w3, b3)


def _reference(h, params):
    w1, b1, w2, b2, w3, b3 = params
    y = jnp.maximum(h @ w1 + b1[0], 0.0)
    y = jnp.maximum(y @ w2 + b2[0], 0.0)
    return y @ w3 + b3[0]


if __name__ == "__main__":
    key = jax.random.PRNGKey(0)
    hidden_dim = 32
    bsz, sc_num, st_num = 2, 7, 6  # 26 total rows -> exercises the padding path

    k1, k2, k3 = jax.random.split(key, 3)
    params = init_params(k1, hidden_dim)
    h_sc = jax.random.normal(k2, (bsz, sc_num, hidden_dim), jnp.float32)
    h_st = jax.random.normal(k3, (bsz, st_num, hidden_dim), jnp.float32)

    out_sc, out_st = decoder_forward(h_sc, h_st, params)
    jax.block_until_ready((out_sc, out_st))

    ref_sc = _reference(h_sc, params)
    ref_st = _reference(h_st, params)
    assert out_sc.shape == (bsz, sc_num, OUT_DIM)
    assert out_st.shape == (bsz, st_num, OUT_DIM)
    assert jnp.allclose(out_sc, ref_sc, atol=1e-4, rtol=1e-4)
    assert jnp.allclose(out_st, ref_st, atol=1e-4, rtol=1e-4)

    print("KERNEL_OK")
</pallas_src>

<mosaic_0001>
module attributes {stable_mosaic.version = 11 : i64} {
  func.func @_decoder_kernel(%arg0: i32, %arg1: memref<32x32xf32, #tpu.memory_space<vmem>>, %arg2: memref<32x64xf32, #tpu.memory_space<vmem>>, %arg3: memref<1x64xf32, #tpu.memory_space<vmem>>, %arg4: memref<64x64xf32, #tpu.memory_space<vmem>>, %arg5: memref<1x64xf32, #tpu.memory_space<vmem>>, %arg6: memref<64x2000xf32, #tpu.memory_space<vmem>>, %arg7: memref<1x2000xf32, #tpu.memory_space<vmem>>, %arg8: memref<32x2000xf32, #tpu.memory_space<vmem>>) attributes {dimension_semantics = [#tpu.dimension_semantics<parallel>], iteration_bounds = array<i64: 1>, scalar_prefetch = 0 : i64, scratch_operands = 0 : i64, tpu.core_type = #tpu.core_type<tc>, window_params = [{transform_indices = @transform_0, window_bounds = array<i64: 32, 32>}, {pipeline_mode = #tpu.pipeline_mode<synchronous>, transform_indices = @transform_1, window_bounds = array<i64: 32, 64>}, {pipeline_mode = #tpu.pipeline_mode<synchronous>, transform_indices = @transform_2, window_bounds = array<i64: 1, 64>}, {pipeline_mode = #tpu.pipeline_mode<synchronous>, transform_indices = @transform_3, window_bounds = array<i64: 64, 64>}, {pipeline_mode = #tpu.pipeline_mode<synchronous>, transform_indices = @transform_4, window_bounds = array<i64: 1, 64>}, {pipeline_mode = #tpu.pipeline_mode<synchronous>, transform_indices = @transform_5, window_bounds = array<i64: 64, 2000>}, {pipeline_mode = #tpu.pipeline_mode<synchronous>, transform_indices = @transform_6, window_bounds = array<i64: 1, 2000>}, {transform_indices = @transform_7, window_bounds = array<i64: 32, 2000>}]} {
    %c0 = arith.constant 0 : index
    %c0_0 = arith.constant 0 : index
    %0 = vector.load %arg1[%c0, %c0_0] : memref<32x32xf32, #tpu.memory_space<vmem>>, vector<32x32xf32>
    %c0_1 = arith.constant 0 : index
    %c0_2 = arith.constant 0 : index
    %1 = vector.load %arg2[%c0_1, %c0_2] : memref<32x64xf32, #tpu.memory_space<vmem>>, vector<32x64xf32>
    %cst = arith.constant dense<0.000000e+00> : vector<32x64xf32>
    %2 = tpu.matmul %0, %1, %cst {dimension_numbers = #tpu.dot_dimension_numbers<[1], [0], [0], [1], [0, 0, 1, 1], [], []>} : vector<32x32xf32>, vector<32x64xf32>, vector<32x64xf32> -> vector<32x64xf32>
    %c0_3 = arith.constant 0 : index
    %c0_4 = arith.constant 0 : index
    %3 = vector.load %arg3[%c0_3, %c0_4] : memref<1x64xf32, #tpu.memory_space<vmem>>, vector<1x64xf32>
    %4 = vector.broadcast %3 : vector<1x64xf32> to vector<32x64xf32>
    %5 = arith.addf %2, %4 : vector<32x64xf32>
    %cst_5 = arith.constant 0.000000e+00 : f32
    %6 = vector.broadcast %cst_5 : f32 to vector<32x64xf32>
    %7 = arith.maximumf %5, %6 : vector<32x64xf32>
    %c0_6 = arith.constant 0 : index
    %c0_7 = arith.constant 0 : index
    %8 = vector.load %arg4[%c0_6, %c0_7] : memref<64x64xf32, #tpu.memory_space<vmem>>, vector<64x64xf32>
    %cst_8 = arith.constant dense<0.000000e+00> : vector<32x64xf32>
    %9 = tpu.matmul %7, %8, %cst_8 {dimension_numbers = #tpu.dot_dimension_numbers<[1], [0], [0], [1], [0, 0, 1, 1], [], []>} : vector<32x64xf32>, vector<64x64xf32>, vector<32x64xf32> -> vector<32x64xf32>
    %c0_9 = arith.constant 0 : index
    %c0_10 = arith.constant 0 : index
    %10 = vector.load %arg5[%c0_9, %c0_10] : memref<1x64xf32, #tpu.memory_space<vmem>>, vector<1x64xf32>
    %11 = vector.broadcast %10 : vector<1x64xf32> to vector<32x64xf32>
    %12 = arith.addf %9, %11 : vector<32x64xf32>
    %cst_11 = arith.constant 0.000000e+00 : f32
    %13 = vector.broadcast %cst_11 : f32 to vector<32x64xf32>
    %14 = arith.maximumf %12, %13 : vector<32x64xf32>
    %c0_12 = arith.constant 0 : index
    %c0_13 = arith.constant 0 : index
    %15 = vector.load %arg6[%c0_12, %c0_13] : memref<64x2000xf32, #tpu.memory_space<vmem>>, vector<64x2000xf32>
    %cst_14 = arith.constant dense<0.000000e+00> : vector<32x2000xf32>
    %16 = tpu.matmul %14, %15, %cst_14 {dimension_numbers = #tpu.dot_dimension_numbers<[1], [0], [0], [1], [0, 0, 1, 1], [], []>} : vector<32x64xf32>, vector<64x2000xf32>, vector<32x2000xf32> -> vector<32x2000xf32>
    %c0_15 = arith.constant 0 : index
    %c0_16 = arith.constant 0 : index
    %17 = vector.load %arg7[%c0_15, %c0_16] : memref<1x2000xf32, #tpu.memory_space<vmem>>, vector<1x2000xf32>
    %18 = vector.broadcast %17 : vector<1x2000xf32> to vector<32x2000xf32>
    %19 = arith.addf %16, %18 : vector<32x2000xf32>
    %c0_17 = arith.constant 0 : index
    %c0_18 = arith.constant 0 : index
    %20 = vector.load %arg8[%c0_17, %c0_18] : memref<32x2000xf32, #tpu.memory_space<vmem>>, vector<32x2000xf32>
    tpu.vector_store %arg8[%c0_17, %c0_18], %19 {strides = array<i32>} : memref<32x2000xf32, #tpu.memory_space<vmem>>, vector<32x2000xf32>,
    return
  }
  func.func @transform_0(%arg0: i32) -> (i32, i32) {
    %c0_i32 = arith.constant 0 : i32
    %c0_i32_0 = arith.constant 0 : i32
    return %arg0, %c0_i32 : i32, i32
  }
  func.func @transform_1(%arg0: i32) -> (i32, i32) {
    %c0_i32 = arith.constant 0 : i32
    %c0_i32_0 = arith.constant 0 : i32
    %c0_i32_1 = arith.constant 0 : i32
    return %c0_i32, %c0_i32_0 : i32, i32
  }
  func.func @transform_2(%arg0: i32) -> (i32, i32) {
    %c0_i32 = arith.constant 0 : i32
    %c0_i32_0 = arith.constant 0 : i32
    %c0_i32_1 = arith.constant 0 : i32
    return %c0_i32, %c0_i32_0 : i32, i32
  }
  func.func @transform_3(%arg0: i32) -> (i32, i32) {
    %c0_i32 = arith.constant 0 : i32
    %c0_i32_0 = arith.constant 0 : i32
    %c0_i32_1 = arith.constant 0 : i32
    return %c0_i32, %c0_i32_0 : i32, i32
  }
  func.func @transform_4(%arg0: i32) -> (i32, i32) {
    %c0_i32 = arith.constant 0 : i32
    %c0_i32_0 = arith.constant 0 : i32
    %c0_i32_1 = arith.constant 0 : i32
    return %c0_i32, %c0_i32_0 : i32, i32
  }
  func.func @transform_5(%arg0: i32) -> (i32, i32) {
    %c0_i32 = arith.constant 0 : i32
    %c0_i32_0 = arith.constant 0 : i32
    %c0_i32_1 = arith.constant 0 : i32
    return %c0_i32, %c0_i32_0 : i32, i32
  }
  func.func @transform_6(%arg0: i32) -> (i32, i32) {
    %c0_i32 = arith.constant 0 : i32
    %c0_i32_0 = arith.constant 0 : i32
    %c0_i32_1 = arith.constant 0 : i32
    return %c0_i32, %c0_i32_0 : i32, i32
  }
  func.func @transform_7(%arg0: i32) -> (i32, i32) {
    %c0_i32 = arith.constant 0 : i32
    %c0_i32_0 = arith.constant 0 : i32
    return %arg0, %c0_i32 : i32, i32
  }
}

</mosaic_0001>

<llo_original>
// kernel: _decoder_mlp_padded.1
$region0: #{_decoder_mlp_padded.1}
  #allocation0 [shape = 'u32[]', space=smem, size = 0x4, offset = 0x4, fixed_abs, tag = 'smem constant byte address 0x4 - core index']
  #allocation1 [shape = 'u32[144,128]{1,0:T(1,128)}', space=vmem, size = 0x12000, scoped, tag = 'internal scratch']
  %s0 = inlined_call_operand.hbm [shape: f32[32,32], index: 0, kind: input, shape index: {}]
  %s1 = inlined_call_operand.hbm [shape: f32[32,64], index: 1, kind: input, shape index: {}]
  %s2 = inlined_call_operand.vmem [shape: f32[1,64], index: 2, kind: input, shape index: {}]
  %s3 = inlined_call_operand.hbm [shape: f32[64,64], index: 3, kind: input, shape index: {}]
  %s4 = inlined_call_operand.vmem [shape: f32[1,64], index: 4, kind: input, shape index: {}]
  %s5 = inlined_call_operand.hbm [shape: f32[64,2000], index: 5, kind: input, shape index: {}]
  %s6 = inlined_call_operand.vmem [shape: f32[1,2000], index: 6, kind: input, shape index: {}]
  %s7 = inlined_call_operand.hbm [shape: f32[32,2000], index: 7, kind: output, shape index: {}]
  %s8 = sld [smem:[#allocation0]]
  $region54: #{_decoder_mlp_padded.1} parent=0
    _
  %s10 = ssub.s32 1, %s8
  %s11 = scalar_select 0, %s10, %s8
  $region1: #{_decoder_mlp_padded.1} parent=0
    #allocation2 [shape = 'u8[16384]{0}', space=vmem, size = 0x4000, scoped, tag = 'input window, operand 0, single buffered']
    #allocation3 [shape = 's32[1]{0}', space=sflag, size = 0x4, scoped, tag = 'scoped memory for _decoder_mlp_padded.1']
    #allocation4 [shape = 's32[1]{0}', space=sflag, size = 0x4, scoped, tag = 'scoped memory for _decoder_mlp_padded.1']
    #allocation5 [shape = 'u8[16384]{0}', space=vmem, size = 0x4000, scoped, tag = 'input window, operand 1, single buffered']
    #allocation6 [shape = 's32[1]{0}', space=sflag, size = 0x4, scoped, tag = 'scoped memory for _decoder_mlp_padded.1']
    #allocation7 [shape = 'u8[32768]{0}', space=vmem, size = 0x8000, scoped, tag = 'input window, operand 3, single buffered']
    #allocation8 [shape = 'u8[524288]{0}', space=vmem, size = 0x80000, scoped, tag = 'input window, operand 5, single buffered']
    #allocation9 [shape = 's32[1]{0}', space=sflag, size = 0x4, scoped, tag = 'scoped memory for _decoder_mlp_padded.1']
    #allocation10 [shape = 'u8[262144]{0}', space=vmem, size = 0x40000, scoped, tag = 'output window, operand 0, single buffered']
    %12 = vsyncpa [#allocation3], 0
    %13 = vsyncpa [#allocation6], 0
    %14 = vsyncpa [#allocation9], 0
    %15 = vsyncpa [#allocation4], 0
    // Predicated region
    $region2: #{_decoder_mlp_padded.1} parent=1 // pred_check
      _
    $region3: #{_decoder_mlp_padded.1} parent=1 // pred_check_branch
      %17 = sbr.rel (0) target = $region5
    $region4: #{_decoder_mlp_padded.1} parent=1 // pred_region
      %s19 = ssub.s32 512, 512
      %20 = vsyncadd [#allocation3], %s19
      %s21 = sshll.u32 [#allocation2], 4
      %s22 = int_to_ptr.vmem [resolvable:$true] %s21
      %27 = dma.hbm_to_vmem [thread:$0]  %s0, 512, %s22, [#allocation3], 128, 128, 8
    $region5: #{_decoder_mlp_padded.1} parent=1 // pred_fallthru
      _
    // Predicated region
    $region6: #{_decoder_mlp_padded.1} parent=1 // pred_check
      _
    $region7: #{_decoder_mlp_padded.1} parent=1 // pred_check_branch
      %29 = sbr.rel (0) target = $region9
    $region8: #{_decoder_mlp_padded.1} parent=1 // pred_region
      %s31 = ssub.s32 512, 512
      %32 = vsyncadd [#allocation6], %s31
      %s33 = sshll.u32 [#allocation5], 4
      %s34 = int_to_ptr.vmem [resolvable:$true] %s33
      %39 = dma.hbm_to_vmem [thread:$0]  %s1, 512, %s34, [#allocation6], 128, 128, 8
    $region9: #{_decoder_mlp_padded.1} parent=1 // pred_fallthru
      _
    // Predicated region
    $region10: #{_decoder_mlp_padded.1} parent=1 // pred_check
      _
    $region11: #{_decoder_mlp_padded.1} parent=1 // pred_check_branch
      %41 = sbr.rel (0) target = $region13
    $region12: #{_decoder_mlp_padded.1} parent=1 // pred_region
      _
    $region13: #{_decoder_mlp_padded.1} parent=1 // pred_fallthru
      _
    // Predicated region
    $region14: #{_decoder_mlp_padded.1} parent=1 // pred_check
      _
    $region15: #{_decoder_mlp_padded.1} parent=1 // pred_check_branch
      %43 = sbr.rel (0) target = $region17
    $region16: #{_decoder_mlp_padded.1} parent=1 // pred_region
      %s45 = ssub.s32 1024, 1024
      %46 = vsyncadd [#allocation6], %s45
      %s47 = sshll.u32 [#allocation7], 4
      %s48 = int_to_ptr.vmem [resolvable:$true] %s47
      %53 = dma.hbm_to_vmem [thread:$0]  %s3, 1024, %s48, [#allocation6], 128, 128, 8
    $region17: #{_decoder_mlp_padded.1} parent=1 // pred_fallthru
      _
    // Predicated region
    $region18: #{_decoder_mlp_padded.1} parent=1 // pred_check
      _
    $region19: #{_decoder_mlp_padded.1} parent=1 // pred_check_branch
      %55 = sbr.rel (0) target = $region21
    $region20: #{_decoder_mlp_padded.1} parent=1 // pred_region
      _
    $region21: #{_decoder_mlp_padded.1} parent=1 // pred_fallthru
      _
    // Predicated region
    $region22: #{_decoder_mlp_padded.1} parent=1 // pred_check
      _
    $region23: #{_decoder_mlp_padded.1} parent=1 // pred_check_branch
      %57 = sbr.rel (0) target = $region25
    $region24: #{_decoder_mlp_padded.1} parent=1 // pred_region
      %s59 = ssub.s32 16384, 16384
      %60 = vsyncadd [#allocation9], %s59
      %s61 = sshll.u32 [#allocation8], 4
      %s62 = int_to_ptr.vmem [resolvable:$true] %s61
      %67 = dma.hbm_to_vmem [thread:$0]  %s5, 16384, %s62, [#allocation9], 2048, 2048, 128
    $region25: #{_decoder_mlp_padded.1} parent=1 // pred_fallthru
      _
    // Predicated region
    $region26: #{_decoder_mlp_padded.1} parent=1 // pred_check
      _
    $region27: #{_decoder_mlp_padded.1} parent=1 // pred_check_branch
      %69 = sbr.rel (0) target = $region29
    $region28: #{_decoder_mlp_padded.1} parent=1 // pred_region
      _
    $region29: #{_decoder_mlp_padded.1} parent=1 // pred_fallthru
      _
    // Predicated region
    $region30: #{_decoder_mlp_padded.1} parent=1 // pred_check
      _
    $region31: #{_decoder_mlp_padded.1} parent=1 // pred_check_branch
      %71 = sbr.rel (0) target = $region33
    $region32: #{_decoder_mlp_padded.1} parent=1 // pred_region
      %72 = dma.done [#allocation3], 512
    $region33: #{_decoder_mlp_padded.1} parent=1 // pred_fallthru
      _
    // Predicated region
    $region34: #{_decoder_mlp_padded.1} parent=1 // pred_check
      _
    $region35: #{_decoder_mlp_padded.1} parent=1 // pred_check_branch
      %74 = sbr.rel (0) target = $region37
    $region36: #{_decoder_mlp_padded.1} parent=1 // pred_region
      %75 = dma.done [#allocation6], 512
    $region37: #{_decoder_mlp_padded.1} parent=1 // pred_fallthru
      _
    // Predicated region
    $region38: #{_decoder_mlp_padded.1} parent=1 // pred_check
      _
    $region39: #{_decoder_mlp_padded.1} parent=1 // pred_check_branch
      %77 = sbr.rel (0) target = $region41
    $region40: #{_decoder_mlp_padded.1} parent=1 // pred_region
      %78 = dma.done [#allocation6], 1024
    $region41: #{_decoder_mlp_padded.1} parent=1 // pred_fallthru
      _
    // Predicated region
    $region42: #{_decoder_mlp_padded.1} parent=1 // pred_check
      _
    $region43: #{_decoder_mlp_padded.1} parent=1 // pred_check_branch
      %80 = sbr.rel (0) target = $region45
    $region44: #{_decoder_mlp_padded.1} parent=1 // pred_region
      %81 = dma.done [#allocation9], 16384
    $region45: #{_decoder_mlp_padded.1} parent=1 // pred_fallthru
      _
    %v82 = vld [vmem:[#allocation2] sm:$0xff]
    %v83 = vld [vmem:[#allocation2 + $0x8] sm:$0xff]
    %v84 = vld [vmem:[#allocation2 + $0x10] sm:$0xff]
    %v85 = vld [vmem:[#allocation2 + $0x18] sm:$0xff]
    %v86 = vld [vmem:[#allocation5] sm:$0xff]
    %v87 = vld [vmem:[#allocation5 + $0x8] sm:$0xff]
    %v88 = vld [vmem:[#allocation5 + $0x10] sm:$0xff]
    %v89 = vld [vmem:[#allocation5 + $0x18] sm:$0xff]
    %v90 = vld [vmem:[%s2] sm:$0x1]
    %v92 = vlaneseq
    %v93 = vshrl.u32 %v92, 7
    %v94 = vsub.s32 0, %v93
    %v95 = vrot.slane %v90, %v94
    %vm97 = vcmask 261120
    %v99 = vsel %vm97, %v82, 0
    %v102 = vsel %vm97, %v83, 0
    %v105 = vsel %vm97, %v84, 0
    %v108 = vsel %vm97, %v85, 0
    %110 = vmatprep.subr.mxu0 0.0
    %111 = vmatpush1.msra.mxu0 %v86
    %112 = vmatprep.subr.mxu0 0.0
    %113 = vmatpush1.msra.mxu0 %v87
    %114 = vmatprep.subr.mxu0 0.0
    %115 = vmatpush1.msra.mxu0 %v88
    %116 = vmatprep.subr.mxu0 0.0
    %117 = vmatpush1.msra.mxu0 %v89
    %118 = vmatprep.subr.mxu0 0.0
    %119 = vmatpush1.msra.mxu0 0.0
    %120 = vmatprep.subr.mxu0 0.0
    %121 = vmatpush1.msra.mxu0 0.0
    %122 = vmatprep.subr.mxu0 0.0
    %123 = vmatpush1.msra.mxu0 0.0
    %124 = vmatprep.subr.mxu0 0.0
    %125 = vmatpush1.msra.mxu0 0.0
    %126 = vmatprep.subr.mxu0 0.0
    %127 = vmatpush1.msra.mxu0 0.0
    %128 = vmatprep.subr.mxu0 0.0
    %129 = vmatpush1.msra.mxu0 0.0
    %130 = vmatprep.subr.mxu0 0.0
    %131 = vmatpush1.msra.mxu0 0.0
    %132 = vmatprep.subr.mxu0 0.0
    %133 = vmatpush1.msra.mxu0 0.0
    %134 = vmatprep.subr.mxu0 0.0
    %135 = vmatpush1.msra.mxu0 0.0
    %136 = vmatprep.subr.mxu0 0.0
    %137 = vmatpush1.msra.mxu0 0.0
    %138 = vmatprep.subr.mxu0 0.0
    %139 = vmatpush1.msra.mxu0 0.0
    %140 = vmatprep.subr.mxu0 0.0
    %141 = vmatpush1.msra.mxu0 0.0
    %142 = vmatprep.subr.mxu0 0.0
    %143 = vmatpush1.msra.mxu0 0.0
    %144 = vmatprep.subr.mxu0 0.0
    %145 = vmatpush1.msra.mxu0 0.0
    %146 = vmatprep.subr.mxu0 0.0
    %147 = vmatpush1.msra.mxu0 0.0
    %148 = vmatprep.subr.mxu0 0.0
    %149 = vmatpush1.msra.mxu0 0.0
    %150 = vmatprep.subr.mxu0 0.0
    %151 = vmatpush1.msra.mxu0 0.0
    %152 = vmatprep.subr.mxu0 0.0
    %153 = vmatpush1.msra.mxu0 0.0
    %154 = vmatprep.subr.mxu0 0.0
    %155 = vmatpush1.msra.mxu0 0.0
    %156 = vmatprep.subr.mxu0 0.0
    %157 = vmatpush1.msra.mxu0 0.0
    %158 = vmatprep.subr.mxu0 0.0
    %159 = vmatpush1.msra.mxu0 0.0
    %160 = vmatprep.subr.mxu0 0.0
    %161 = vmatpush1.msra.mxu0 0.0
    %162 = vmatprep.subr.mxu0 0.0
    %163 = vmatpush1.msra.mxu0 0.0
    %164 = vmatprep.subr.mxu0 0.0
    %165 = vmatpush1.msra.mxu0 0.0
    %166 = vmatprep.subr.mxu0 0.0
    %167 = vmatpush1.msra.mxu0 0.0
    %168 = vmatprep.subr.mxu0 0.0
    %169 = vmatpush1.msra.mxu0 0.0
    %170 = vmatprep.subr.mxu0 0.0
    %171 = vmatpush1.msra.mxu0 0.0
    %172 = vmatprep.subr.mxu0 0.0
    %173 = vmatpush1.msra.mxu0 0.0
    %174 = vmatprep.mubr.f32.mxu0 0.0
    %175 = vmatmul.mubr.f32.gmra.mrb[0].mxu0 %v99
    %v176 = vpop.f32.mrb[0].mxu0
    %v177 = vadd.f32 %v95, %v176
    %v178 = vpop.f32.mrb[0].mxu0
    %179 = vmatprep.mubr.f32.mxu0 0.0
    %180 = vmatmul.mubr.f32.gmra.mrb[0].mxu0 %v102
    %v181 = vpop.f32.mrb[0].mxu0
    %v182 = vadd.f32 %v95, %v181
    %v183 = vpop.f32.mrb[0].mxu0
    %184 = vmatprep.mubr.f32.mxu0 0.0
    %185 = vmatmul.mubr.f32.gmra.mrb[0].mxu0 %v105
    %v186 = vpop.f32.mrb[0].mxu0
    %v187 = vadd.f32 %v95, %v186
    %v188 = vpop.f32.mrb[0].mxu0
    %189 = vmatprep.mubr.f32.mxu0 0.0
    %190 = vmatmul.mubr.f32.gmra.mrb[0].mxu0 %v108
    %v191 = vpop.f32.mrb[0].mxu0
    %v192 = vadd.f32 %v95, %v191
    %v193 = vpop.f32.mrb[0].mxu0
    %194 = vdwg.mxu0
    %v195 = vmax.f32 %v177, 0.0
    %v196 = vmax.f32 %v182, 0.0
    %v197 = vmax.f32 %v187, 0.0
    %v198 = vmax.f32 %v192, 0.0
    %v199 = vld [vmem:[#allocation7] sm:$0xff]
    %v200 = vld [vmem:[#allocation7 + $0x8] sm:$0xff]
    %v201 = vld [vmem:[#allocation7 + $0x10] sm:$0xff]
    %v202 = vld [vmem:[#allocation7 + $0x18] sm:$0xff]
    %v203 = vld [vmem:[#allocation7 + $0x20] sm:$0xff]
    %v204 = vld [vmem:[#allocation7 + $0x28] sm:$0xff]
    %v205 = vld [vmem:[#allocation7 + $0x30] sm:$0xff]
    %v206 = vld [vmem:[#allocation7 + $0x38] sm:$0xff]
    %v207 = vld [vmem:[%s4] sm:$0x1]
    %v209 = vlaneseq
    %v210 = vshrl.u32 %v209, 7
    %v211 = vsub.s32 0, %v210
    %v212 = vrot.slane %v207, %v211
    %vm214 = vcmask 523264
    %v216 = vsel %vm214, %v195, 0
    %v219 = vsel %vm214, %v196, 0
    %v222 = vsel %vm214, %v197, 0
    %v225 = vsel %vm214, %v198, 0
    %227 = vmatprep.subr.mxu0 0.0
    %228 = vmatpush1.msra.mxu0 %v199
    %229 = vmatprep.subr.mxu0 0.0
    %230 = vmatpush1.msra.mxu0 %v200
    %231 = vmatprep.subr.mxu0 0.0
    %232 = vmatpush1.msra.mxu0 %v201
    %233 = vmatprep.subr.mxu0 0.0
    %234 = vmatpush1.msra.mxu0 %v202
    %235 = vmatprep.subr.mxu0 0.0
    %236 = vmatpush1.msra.mxu0 %v203
    %237 = vmatprep.subr.mxu0 0.0
    %238 = vmatpush1.msra.mxu0 %v204
    %239 = vmatprep.subr.mxu0 0.0
    %240 = vmatpush1.msra.mxu0 %v205
    %241 = vmatprep.subr.mxu0 0.0
    %242 = vmatpush1.msra.mxu0 %v206
    %243 = vmatprep.subr.mxu0 0.0
    %244 = vmatpush1.msra.mxu0 0.0
    %245 = vmatprep.subr.mxu0 0.0
    %246 = vmatpush1.msra.mxu0 0.0
    %247 = vmatprep.subr.mxu0 0.0
    %248 = vmatpush1.msra.mxu0 0.0
    %249 = vmatprep.subr.mxu0 0.0
    %250 = vmatpush1.msra.mxu0 0.0
    %251 = vmatprep.subr.mxu0 0.0
    %252 = vmatpush1.msra.mxu0 0.0
    %253 = vmatprep.subr.mxu0 0.0
    %254 = vmatpush1.msra.mxu0 0.0
    %255 = vmatprep.subr.mxu0 0.0
    %256 = vmatpush1.msra.mxu0 0.0
    %257 = vmatprep.subr.mxu0 0.0
    %258 = vmatpush1.msra.mxu0 0.0
    %259 = vmatprep.subr.mxu0 0.0
    %260 = vmatpush1.msra.mxu0 0.0
    %261 = vmatprep.subr.mxu0 0.0
    %262 = vmatpush1.msra.mxu0 0.0
    %263 = vmatprep.subr.mxu0 0.0
    %264 = vmatpush1.msra.mxu0 0.0
    %265 = vmatprep.subr.mxu0 0.0
    %266 = vmatpush1.msra.mxu0 0.0
    %267 = vmatprep.subr.mxu0 0.0
    %268 = vmatpush1.msra.mxu0 0.0
    %269 = vmatprep.subr.mxu0 0.0
    %270 = vmatpush1.msra.mxu0 0.0
    %271 = vmatprep.subr.mxu0 0.0
    %272 = vmatpush1.msra.mxu0 0.0
    %273 = vmatprep.subr.mxu0 0.0
    %274 = vmatpush1.msra.mxu0 0.0
    %275 = vmatprep.subr.mxu0 0.0
    %276 = vmatpush1.msra.mxu0 0.0
    %277 = vmatprep.subr.mxu0 0.0
    %278 = vmatpush1.msra.mxu0 0.0
    %279 = vmatprep.subr.mxu0 0.0
    %280 = vmatpush1.msra.mxu0 0.0
    %281 = vmatprep.subr.mxu0 0.0
    %282 = vmatpush1.msra.mxu0 0.0
    %283 = vmatprep.subr.mxu0 0.0
    %284 = vmatpush1.msra.mxu0 0.0
    %285 = vmatprep.subr.mxu0 0.0
    %286 = vmatpush1.msra.mxu0 0.0
    %287 = vmatprep.subr.mxu0 0.0
    %288 = vmatpush1.msra.mxu0 0.0
    %289 = vmatprep.subr.mxu0 0.0
    %290 = vmatpush1.msra.mxu0 0.0
    %291 = vmatprep.mubr.f32.mxu0 0.0
    %292 = vmatmul.mubr.f32.gmra.mrb[0].mxu0 %v216
    %v293 = vpop.f32.mrb[0].mxu0
    %v294 = vadd.f32 %v212, %v293
    %v295 = vpop.f32.mrb[0].mxu0
    %296 = vmatprep.mubr.f32.mxu0 0.0
    %297 = vmatmul.mubr.f32.gmra.mrb[0].mxu0 %v219
    %v298 = vpop.f32.mrb[0].mxu0
    %v299 = vadd.f32 %v212, %v298
    %v300 = vpop.f32.mrb[0].mxu0
    %301 = vmatprep.mubr.f32.mxu0 0.0
    %302 = vmatmul.mubr.f32.gmra.mrb[0].mxu0 %v222
    %v303 = vpop.f32.mrb[0].mxu0
    %v304 = vadd.f32 %v212, %v303
    %v305 = vpop.f32.mrb[0].mxu0
    %306 = vmatprep.mubr.f32.mxu0 0.0
    %307 = vmatmul.mubr.f32.gmra.mrb[0].mxu0 %v225
    %v308 = vpop.f32.mrb[0].mxu0
    %v309 = vadd.f32 %v212, %v308
    %v310 = vpop.f32.mrb[0].mxu0
    %311 = vdwg.mxu0
    %v312 = vmax.f32 %v294, 0.0
    %v313 = vmax.f32 %v299, 0.0
    %v314 = vmax.f32 %v304, 0.0
    %v315 = vmax.f32 %v309, 0.0
    %v316 = vld [vmem:[#allocation8] sm:$0xff]
    %v317 = vld [vmem:[#allocation8 + $0x8] sm:$0xff]
    %v318 = vld [vmem:[#allocation8 + $0x10] sm:$0xff]
    %v319 = vld [vmem:[#allocation8 + $0x18] sm:$0xff]
    %v320 = vld [vmem:[#allocation8 + $0x20] sm:$0xff]
    %v321 = vld [vmem:[#allocation8 + $0x28] sm:$0xff]
    %v322 = vld [vmem:[#allocation8 + $0x30] sm:$0xff]
    %v323 = vld [vmem:[#allocation8 + $0x38] sm:$0xff]
    %v324 = vld [vmem:[#allocation8 + $0x40] sm:$0xff]
    %v325 = vld [vmem:[#allocation8 + $0x48] sm:$0xff]
    %v326 = vld [vmem:[#allocation8 + $0x50] sm:$0xff]
    %v327 = vld [vmem:[#allocation8 + $0x58] sm:$0xff]
    %v328 = vld [vmem:[#allocation8 + $0x60] sm:$0xff]
    %v329 = vld [vmem:[#allocation8 + $0x68] sm:$0xff]
    %v330 = vld [vmem:[#allocation8 + $0x70] sm:$0xff]
    %v331 = vld [vmem:[#allocation8 + $0x78] sm:$0xff]
    %v332 = vld [vmem:[#allocation8 + $0x80] sm:$0xff]
    %v333 = vld [vmem:[#allocation8 + $0x88] sm:$0xff]
    %v334 = vld [vmem:[#allocation8 + $0x90] sm:$0xff]
    %v335 = vld [vmem:[#allocation8 + $0x98] sm:$0xff]
    %v336 = vld [vmem:[#allocation8 + $0xa0] sm:$0xff]
    %v337 = vld [vmem:[#allocation8 + $0xa8] sm:$0xff]
    %v338 = vld [vmem:[#allocation8 + $0xb0] sm:$0xff]
    %v339 = vld [vmem:[#allocation8 + $0xb8] sm:$0xff]
    %v340 = vld [vmem:[#allocation8 + $0xc0] sm:$0xff]
    %v341 = vld [vmem:[#allocation8 + $0xc8] sm:$0xff]
    %v342 = vld [vmem:[#allocation8 + $0xd0] sm:$0xff]
    %v343 = vld [vmem:[#allocation8 + $0xd8] sm:$0xff]
    %v344 = vld [vmem:[#allocation8 + $0xe0] sm:$0xff]
    %v345 = vld [vmem:[#allocation8 + $0xe8] sm:$0xff]
    %v346 = vld [vmem:[#allocation8 + $0xf0] sm:$0xff]
    %v347 = vld [vmem:[#allocation8 + $0xf8] sm:$0xff]
    %v348 = vld [vmem:[#allocation8 + $0x100] sm:$0xff]
    %v349 = vld [vmem:[#allocation8 + $0x108] sm:$0xff]
    %v350 = vld [vmem:[#allocation8 + $0x110] sm:$0xff]
    %v351 = vld [vmem:[#allocation8 + $0x118] sm:$0xff]
    %v352 = vld [vmem:[#allocation8 + $0x120] sm:$0xff]
    %v353 = vld [vmem:[#allocation8 + $0x128] sm:$0xff]
    %v354 = vld [vmem:[#allocation8 + $0x130] sm:$0xff]
    %v355 = vld [vmem:[#allocation8 + $0x138] sm:$0xff]
    %v356 = vld [vmem:[#allocation8 + $0x140] sm:$0xff]
    %v357 = vld [vmem:[#allocation8 + $0x148] sm:$0xff]
    %v358 = vld [vmem:[#allocation8 + $0x150] sm:$0xff]
    %v359 = vld [vmem:[#allocation8 + $0x158] sm:$0xff]
    %v360 = vld [vmem:[#allocation8 + $0x160] sm:$0xff]
    %v361 = vld [vmem:[#allocation8 + $0x168] sm:$0xff]
    %v362 = vld [vmem:[#allocation8 + $0x170] sm:$0xff]
    %v363 = vld [vmem:[#allocation8 + $0x178] sm:$0xff]
    %v364 = vld [vmem:[#allocation8 + $0x180] sm:$0xff]
    %v365 = vld [vmem:[#allocation8 + $0x188] sm:$0xff]
    %v366 = vld [vmem:[#allocation8 + $0x190] sm:$0xff]
    %v367 = vld [vmem:[#allocation8 + $0x198] sm:$0xff]
    %v368 = vld [vmem:[#allocation8 + $0x1a0] sm:$0xff]
    %v369 = vld [vmem:[#allocation8 + $0x1a8] sm:$0xff]
    %v370 = vld [vmem:[#allocation8 + $0x1b0] sm:$0xff]
    %v371 = vld [vmem:[#allocation8 + $0x1b8] sm:$0xff]
    %v372 = vld [vmem:[#allocation8 + $0x1c0] sm:$0xff]
    %v373 = vld [vmem:[#allocation8 + $0x1c8] sm:$0xff]
    %v374 = vld [vmem:[#allocation8 + $0x1d0] sm:$0xff]
    %v375 = vld [vmem:[#allocation8 + $0x1d8] sm:$0xff]
    %v376 = vld [vmem:[#allocation8 + $0x1e0] sm:$0xff]
    %v377 = vld [vmem:[#allocation8 + $0x1e8] sm:$0xff]
    %v378 = vld [vmem:[#allocation8 + $0x1f0] sm:$0xff]
    %v379 = vld [vmem:[#allocation8 + $0x1f8] sm:$0xff]
    %v380 = vld [vmem:[#allocation8 + $0x200] sm:$0xff]
    %v381 = vld [vmem:[#allocation8 + $0x208] sm:$0xff]
    %v382 = vld [vmem:[#allocation8 + $0x210] sm:$0xff]
    %v383 = vld [vmem:[#allocation8 + $0x218] sm:$0xff]
    %v384 = vld [vmem:[#allocation8 + $0x220] sm:$0xff]
    %v385 = vld [vmem:[#allocation8 + $0x228] sm:$0xff]
    %v386 = vld [vmem:[#allocation8 + $0x230] sm:$0xff]
    %v387 = vld [vmem:[#allocation8 + $0x238] sm:$0xff]
    %v388 = vld [vmem:[#allocation8 + $0x240] sm:$0xff]
    %v389 = vld [vmem:[#allocation8 + $0x248] sm:$0xff]
    %v390 = vld [vmem:[#allocation8 + $0x250] sm:$0xff]
    %v391 = vld [vmem:[#allocation8 + $0x258] sm:$0xff]
    %v392 = vld [vmem:[#allocation8 + $0x260] sm:$0xff]
    %v393 = vld [vmem:[#allocation8 + $0x268] sm:$0xff]
    %v394 = vld [vmem:[#allocation8 + $0x270] sm:$0xff]
    %v395 = vld [vmem:[#allocation8 + $0x278] sm:$0xff]
    %v396 = vld [vmem:[#allocation8 + $0x280] sm:$0xff]
    %v397 = vld [vmem:[#allocation8 + $0x288] sm:$0xff]
    %v398 = vld [vmem:[#allocation8 + $0x290] sm:$0xff]
    %v399 = vld [vmem:[#allocation8 + $0x298] sm:$0xff]
    %v400 = vld [vmem:[#allocation8 + $0x2a0] sm:$0xff]
    %v401 = vld [vmem:[#allocation8 + $0x2a8] sm:$0xff]
    %v402 = vld [vmem:[#allocation8 + $0x2b0] sm:$0xff]
    %v403 = vld [vmem:[#allocation8 + $0x2b8] sm:$0xff]
    %v404 = vld [vmem:[#allocation8 + $0x2c0] sm:$0xff]
    %v405 = vld [vmem:[#allocation8 + $0x2c8] sm:$0xff]
    %v406 = vld [vmem:[#allocation8 + $0x2d0] sm:$0xff]
    %v407 = vld [vmem:[#allocation8 + $0x2d8] sm:$0xff]
    %v408 = vld [vmem:[#allocation8 + $0x2e0] sm:$0xff]
    %v409 = vld [vmem:[#allocation8 + $0x2e8] sm:$0xff]
    %v410 = vld [vmem:[#allocation8 + $0x2f0] sm:$0xff]
    %v411 = vld [vmem:[#allocation8 + $0x2f8] sm:$0xff]
    %v412 = vld [vmem:[#allocation8 + $0x300] sm:$0xff]
    %v413 = vld [vmem:[#allocation8 + $0x308] sm:$0xff]
    %v414 = vld [vmem:[#allocation8 + $0x310] sm:$0xff]
    %v415 = vld [vmem:[#allocation8 + $0x318] sm:$0xff]
    %v416 = vld [vmem:[#allocation8 + $0x320] sm:$0xff]
    %v417 = vld [vmem:[#allocation8 + $0x328] sm:$0xff]
    %v418 = vld [vmem:[#allocation8 + $0x330] sm:$0xff]
    %v419 = vld [vmem:[#allocation8 + $0x338] sm:$0xff]
    %v420 = vld [vmem:[#allocation8 + $0x340] sm:$0xff]
    %v421 = vld [vmem:[#allocation8 + $0x348] sm:$0xff]
    %v422 = vld [vmem:[#allocation8 + $0x350] sm:$0xff]
    %v423 = vld [vmem:[#allocation8 + $0x358] sm:$0xff]
    %v424 = vld [vmem:[#allocation8 + $0x360] sm:$0xff]
    %v425 = vld [vmem:[#allocation8 + $0x368] sm:$0xff]
    %v426 = vld [vmem:[#allocation8 + $0x370] sm:$0xff]
    %v427 = vld [vmem:[#allocation8 + $0x378] sm:$0xff]
    %v428 = vld [vmem:[#allocation8 + $0x380] sm:$0xff]
    %v429 = vld [vmem:[#allocation8 + $0x388] sm:$0xff]
    %v430 = vld [vmem:[#allocation8 + $0x390] sm:$0xff]
    %v431 = vld [vmem:[#allocation8 + $0x398] sm:$0xff]
    %v432 = vld [vmem:[#allocation8 + $0x3a0] sm:$0xff]
    %v433 = vld [vmem:[#allocation8 + $0x3a8] sm:$0xff]
    %v434 = vld [vmem:[#allocation8 + $0x3b0] sm:$0xff]
    %v435 = vld [vmem:[#allocation8 + $0x3b8] sm:$0xff]
    %v436 = vld [vmem:[#allocation8 + $0x3c0] sm:$0xff]
    %v437 = vld [vmem:[#allocation8 + $0x3c8] sm:$0xff]
    %v438 = vld [vmem:[#allocation8 + $0x3d0] sm:$0xff]
    %v439 = vld [vmem:[#allocation8 + $0x3d8] sm:$0xff]
    %v440 = vld [vmem:[#allocation8 + $0x3e0] sm:$0xff]
    %v441 = vld [vmem:[#allocation8 + $0x3e8] sm:$0xff]
    %v442 = vld [vmem:[#allocation8 + $0x3f0] sm:$0xff]
    %v443 = vld [vmem:[#allocation8 + $0x3f8] sm:$0xff]
    %v444 = vld [vmem:[%s6] sm:$0xff]
    %v445 = vld [vmem:[%s6 + $0x8] sm:$0xff]
    %v448 = vlaneseq
    %v449 = vshrl.u32 %v448, 7
    %v450 = vsub.s32 0, %v449
    %v451 = vrot.slane %v444, %v450
    %v452 = vlaneseq
    %v453 = vshrl.u32 %v452, 7
    %v454 = vsub.s32 1, %v453
    %v455 = vrot.slane %v444, %v454
    %v456 = vlaneseq
    %v457 = vshrl.u32 %v456, 7
    %v458 = vsub.s32 2, %v457
    %v459 = vrot.slane %v444, %v458
    %v460 = vlaneseq
    %v461 = vshrl.u32 %v460, 7
    %v462 = vsub.s32 3, %v461
    %v463 = vrot.slane %v444, %v462
    %v464 = vlaneseq
    %v465 = vshrl.u32 %v464, 7
    %v466 = vsub.s32 4, %v465
    %v467 = vrot.slane %v444, %v466
    %v468 = vlaneseq
    %v469 = vshrl.u32 %v468, 7
    %v470 = vsub.s32 5, %v469
    %v471 = vrot.slane %v444, %v470
    %v472 = vlaneseq
    %v473 = vshrl.u32 %v472, 7
    %v474 = vsub.s32 6, %v473
    %v475 = vrot.slane %v444, %v474
    %v476 = vlaneseq
    %v477 = vshrl.u32 %v476, 7
    %v478 = vsub.s32 7, %v477
    %v479 = vrot.slane %v444, %v478
    %v480 = vlaneseq
    %v481 = vshrl.u32 %v480, 7
    %v482 = vsub.s32 0, %v481
    %v483 = vrot.slane %v445, %v482
    %v484 = vlaneseq
    %v485 = vshrl.u32 %v484, 7
    %v486 = vsub.s32 1, %v485
    %v487 = vrot.slane %v445, %v486
    %v488 = vlaneseq
    %v489 = vshrl.u32 %v488, 7
    %v490 = vsub.s32 2, %v489
    %v491 = vrot.slane %v445, %v490
    %v492 = vlaneseq
    %v493 = vshrl.u32 %v492, 7
    %v494 = vsub.s32 3, %v493
    %v495 = vrot.slane %v445, %v494
    %v496 = vlaneseq
    %v497 = vshrl.u32 %v496, 7
    %v498 = vsub.s32 4, %v497
    %v499 = vrot.slane %v445, %v498
    %v500 = vlaneseq
    %v501 = vshrl.u32 %v500, 7
    %v502 = vsub.s32 5, %v501
    %v503 = vrot.slane %v445, %v502
    %v504 = vlaneseq
    %v505 = vshrl.u32 %v504, 7
    %v506 = vsub.s32 6, %v505
    %v507 = vrot.slane %v445, %v506
    %v508 = vlaneseq
    %v509 = vshrl.u32 %v508, 7
    %v510 = vsub.s32 7, %v509
    %v511 = vrot.slane %v445, %v510
    %v529 = vsel %vm214, %v312, 0
    %v532 = vsel %vm214, %v313, 0
    %v535 = vsel %vm214, %v314, 0
    %v538 = vsel %vm214, %v315, 0
    %540 = vmatprep.subr.mxu0 %v317
    %541 = vmatpush1.msra.mxu0 %v316
    %542 = vmatprep.subr.mxu0 %v333
    %543 = vmatpush1.msra.mxu0 %v332
    %544 = vmatprep.subr.mxu0 %v349
    %545 = vmatpush1.msra.mxu0 %v348
    %546 = vmatprep.subr.mxu0 %v365
    %547 = vmatpush1.msra.mxu0 %v364
    %548 = vmatprep.subr.mxu0 %v381
    %549 = vmatpush1.msra.mxu0 %v380
    %550 = vmatprep.subr.mxu0 %v397
    %551 = vmatpush1.msra.mxu0 %v396
    %552 = vmatprep.subr.mxu0 %v413
    %553 = vmatpush1.msra.mxu0 %v412
    %554 = vmatprep.subr.mxu0 %v429
    %555 = vmatpush1.msra.mxu0 %v428
    %556 = vmatprep.subr.mxu0 0.0
    %557 = vmatpush1.msra.mxu0 0.0
    %558 = vmatprep.subr.mxu0 0.0
    %559 = vmatpush1.msra.mxu0 0.0
    %560 = vmatprep.subr.mxu0 0.0
    %561 = vmatpush1.msra.mxu0 0.0
    %562 = vmatprep.subr.mxu0 0.0
    %563 = vmatpush1.msra.mxu0 0.0
    %564 = vmatprep.subr.mxu0 0.0
    %565 = vmatpush1.msra.mxu0 0.0
    %566 = vmatprep.subr.mxu0 0.0
    %567 = vmatpush1.msra.mxu0 0.0
    %568 = vmatprep.subr.mxu0 0.0
    %569 = vmatpush1.msra.mxu0 0.0
    %570 = vmatprep.subr.mxu0 0.0
    %571 = vmatpush1.msra.mxu0 0.0
    %572 = vmatprep.subr.mxu0 0.0
    %573 = vmatpush1.msra.mxu0 0.0
    %574 = vmatprep.subr.mxu0 0.0
    %575 = vmatpush1.msra.mxu0 0.0
    %576 = vmatprep.subr.mxu0 0.0
    %577 = vmatpush1.msra.mxu0 0.0
    %578 = vmatprep.subr.mxu0 0.0
    %579 = vmatpush1.msra.mxu0 0.0
    %580 = vmatprep.subr.mxu0 0.0
    %581 = vmatpush1.msra.mxu0 0.0
    %582 = vmatprep.subr.mxu0 0.0
    %583 = vmatpush1.msra.mxu0 0.0
    %584 = vmatprep.subr.mxu0 0.0
    %585 = vmatpush1.msra.mxu0 0.0
    %586 = vmatprep.subr.mxu0 0.0
    %587 = vmatpush1.msra.mxu0 0.0
    %588 = vmatprep.subr.mxu0 0.0
    %589 = vmatpush1.msra.mxu0 0.0
    %590 = vmatprep.subr.mxu0 0.0
    %591 = vmatpush1.msra.mxu0 0.0
    %592 = vmatprep.subr.mxu0 0.0
    %593 = vmatpush1.msra.mxu0 0.0
    %594 = vmatprep.subr.mxu0 0.0
    %595 = vmatpush1.msra.mxu0 0.0
    %596 = vmatprep.subr.mxu0 0.0
    %597 = vmatpush1.msra.mxu0 0.0
    %598 = vmatprep.subr.mxu0 0.0
    %599 = vmatpush1.msra.mxu0 0.0
    %600 = vmatprep.subr.mxu0 0.0
    %601 = vmatpush1.msra.mxu0 0.0
    %602 = vmatprep.subr.mxu0 0.0
    %603 = vmatpush1.msra.mxu0 0.0
    %604 = vmatprep.mubr.f32.mxu0 0.0
    %605 = vmatmul.mubr.f32.gmra.mrb[0].mxu0 %v529
    %v606 = vpop.f32.mrb[0].mxu0
    %v607 = vadd.f32 %v451, %v606
    %v608 = vpop.f32.mrb[0].mxu0
    %v609 = vadd.f32 %v455, %v608
    %610 = vmatprep.mubr.f32.mxu0 0.0
    %611 = vmatmul.mubr.f32.gmra.mrb[0].mxu0 %v532
    %v612 = vpop.f32.mrb[0].mxu0
    %v613 = vadd.f32 %v451, %v612
    %v614 = vpop.f32.mrb[0].mxu0
    %v615 = vadd.f32 %v455, %v614
    %616 = vmatprep.mubr.f32.mxu0 0.0
    %617 = vmatmul.mubr.f32.gmra.mrb[0].mxu0 %v535
    %v618 = vpop.f32.mrb[0].mxu0
    %v619 = vadd.f32 %v451, %v618
    %v620 = vpop.f32.mrb[0].mxu0
    %v621 = vadd.f32 %v455, %v620
    %622 = vmatprep.mubr.f32.mxu0 0.0
    %623 = vmatmul.mubr.f32.gmra.mrb[0].mxu0 %v538
    %v624 = vpop.f32.mrb[0].mxu0
    %v625 = vadd.f32 %v451, %v624
    %v626 = vpop.f32.mrb[0].mxu0
    %v627 = vadd.f32 %v455, %v626
    %628 = vdwg.mxu0
    %629 = vmatprep.subr.mxu0 %v319
    %630 = vmatpush1.msra.mxu0 %v318
    %631 = vmatprep.subr.mxu0 %v335
    %632 = vmatpush1.msra.mxu0 %v334
    %633 = vmatprep.subr.mxu0 %v351
    %634 = vmatpush1.msra.mxu0 %v350
    %635 = vmatprep.subr.mxu0 %v367
    %636 = vmatpush1.msra.mxu0 %v366
    %637 = vmatprep.subr.mxu0 %v383
    %638 = vmatpush1.msra.mxu0 %v382
    %639 = vmatprep.subr.mxu0 %v399
    %640 = vmatpush1.msra.mxu0 %v398
    %641 = vmatprep.subr.mxu0 %v415
    %642 = vmatpush1.msra.mxu0 %v414
    %643 = vmatprep.subr.mxu0 %v431
    %644 = vmatpush1.msra.mxu0 %v430
    %645 = vmatprep.subr.mxu0 0.0
    %646 = vmatpush1.msra.mxu0 0.0
    %647 = vmatprep.subr.mxu0 0.0
    %648 = vmatpush1.msra.mxu0 0.0
    %649 = vmatprep.subr.mxu0 0.0
    %650 = vmatpush1.msra.mxu0 0.0
    %651 = vmatprep.subr.mxu0 0.0
    %652 = vmatpush1.msra.mxu0 0.0
    %653 = vmatprep.subr.mxu0 0.0
    %654 = vmatpush1.msra.mxu0 0.0
    %655 = vmatprep.subr.mxu0 0.0
    %656 = vmatpush1.msra.mxu0 0.0
    %657 = vmatprep.subr.mxu0 0.0
    %658 = vmatpush1.msra.mxu0 0.0
    %659 = vmatprep.subr.mxu0 0.0
    %660 = vmatpush1.msra.mxu0 0.0
    %661 = vmatprep.subr.mxu0 0.0
    %662 = vmatpush1.msra.mxu0 0.0
    %663 = vmatprep.subr.mxu0 0.0
    %664 = vmatpush1.msra.mxu0 0.0
    %665 = vmatprep.subr.mxu0 0.0
    %666 = vmatpush1.msra.mxu0 0.0
    %667 = vmatprep.subr.mxu0 0.0
    %668 = vmatpush1.msra.mxu0 0.0
    %669 = vmatprep.subr.mxu0 0.0
    %670 = vmatpush1.msra.mxu0 0.0
    %671 = vmatprep.subr.mxu0 0.0
    %672 = vmatpush1.msra.mxu0 0.0
    %673 = vmatprep.subr.mxu0 0.0
    %674 = vmatpush1.msra.mxu0 0.0
    %675 = vmatprep.subr.mxu0 0.0
    %676 = vmatpush1.msra.mxu0 0.0
    %677 = vmatprep.subr.mxu0 0.0
    %678 = vmatpush1.msra.mxu0 0.0
    %679 = vmatprep.subr.mxu0 0.0
    %680 = vmatpush1.msra.mxu0 0.0
    %681 = vmatprep.subr.mxu0 0.0
    %682 = vmatpush1.msra.mxu0 0.0
    %683 = vmatprep.subr.mxu0 0.0
    %684 = vmatpush1.msra.mxu0 0.0
    %685 = vmatprep.subr.mxu0 0.0
    %686 = vmatpush1.msra.mxu0 0.0
    %687 = vmatprep.subr.mxu0 0.0
    %688 = vmatpush1.msra.mxu0 0.0
    %689 = vmatprep.subr.mxu0 0.0
    %690 = vmatpush1.msra.mxu0 0.0
    %691 = vmatprep.subr.mxu0 0.0
    %692 = vmatpush1.msra.mxu0 0.0
    %693 = vmatprep.mubr.f32.mxu0 0.0
    %694 = vmatmul.mubr.f32.gmra.mrb[0].mxu0 %v529
    %v695 = vpop.f32.mrb[0].mxu0
    %v696 = vadd.f32 %v459, %v695
    %v697 = vpop.f32.mrb[0].mxu0
    %v698 = vadd.f32 %v463, %v697
    %699 = vmatprep.mubr.f32.mxu0 0.0
    %700 = vmatmul.mubr.f32.gmra.mrb[0].mxu0 %v532
    %v701 = vpop.f32.mrb[0].mxu0
    %v702 = vadd.f32 %v459, %v701
    %v703 = vpop.f32.mrb[0].mxu0
    %v704 = vadd.f32 %v463, %v703
    %705 = vmatprep.mubr.f32.mxu0 0.0
    %706 = vmatmul.mubr.f32.gmra.mrb[0].mxu0 %v535
    %v707 = vpop.f32.mrb[0].mxu0
    %v708 = vadd.f32 %v459, %v707
    %v709 = vpop.f32.mrb[0].mxu0
    %v710 = vadd.f32 %v463, %v709
    %711 = vmatprep.mubr.f32.mxu0 0.0
    %712 = vmatmul.mubr.f32.gmra.mrb[0].mxu0 %v538
    %v713 = vpop.f32.mrb[0].mxu0
    %v714 = vadd.f32 %v459, %v713
    %v715 = vpop.f32.mrb[0].mxu0
    %v716 = vadd.f32 %v463, %v715
    %717 = vdwg.mxu0
    %718 = vmatprep.subr.mxu0 %v321
    %719 = vmatpush1.msra.mxu0 %v320
    %720 = vmatprep.subr.mxu0 %v337
    %721 = vmatpush1.msra.mxu0 %v336
    %722 = vmatprep.subr.mxu0 %v353
    %723 = vmatpush1.msra.mxu0 %v352
    %724 = vmatprep.subr.mxu0 %v369
    %725 = vmatpush1.msra.mxu0 %v368
    %726 = vmatprep.subr.mxu0 %v385
    %727 = vmatpush1.msra.mxu0 %v384
    %728 = vmatprep.subr.mxu0 %v401
    %729 = vmatpush1.msra.mxu0 %v400
    %730 = vmatprep.subr.mxu0 %v417
    %731 = vmatpush1.msra.mxu0 %v416
    %732 = vmatprep.subr.mxu0 %v433
    %733 = vmatpush1.msra.mxu0 %v432
    %734 = vmatprep.subr.mxu0 0.0
    %735 = vmatpush1.msra.mxu0 0.0
    %736 = vmatprep.subr.mxu0 0.0
    %737 = vmatpush1.msra.mxu0 0.0
    %738 = vmatprep.subr.mxu0 0.0
    %739 = vmatpush1.msra.mxu0 0.0
    %740 = vmatprep.subr.mxu0 0.0
    %741 = vmatpush1.msra.mxu0 0.0
    %742 = vmatprep.subr.mxu0 0.0
    %743 = vmatpush1.msra.mxu0 0.0
    %744 = vmatprep.subr.mxu0 0.0
    %745 = vmatpush1.msra.mxu0 0.0
    %746 = vmatprep.subr.mxu0 0.0
    %747 = vmatpush1.msra.mxu0 0.0
    %748 = vmatprep.subr.mxu0 0.0
    %749 = vmatpush1.msra.mxu0 0.0
    %750 = vmatprep.subr.mxu0 0.0
    %751 = vmatpush1.msra.mxu0 0.0
    %752 = vmatprep.subr.mxu0 0.0
    %753 = vmatpush1.msra.mxu0 0.0
    %754 = vmatprep.subr.mxu0 0.0
    %755 = vmatpush1.msra.mxu0 0.0
    %756 = vmatprep.subr.mxu0 0.0
    %757 = vmatpush1.msra.mxu0 0.0
    %758 = vmatprep.subr.mxu0 0.0
    %759 = vmatpush1.msra.mxu0 0.0
    %760 = vmatprep.subr.mxu0 0.0
    %761 = vmatpush1.msra.mxu0 0.0
    %762 = vmatprep.subr.mxu0 0.0
    %763 = vmatpush1.msra.mxu0 0.0
    %764 = vmatprep.subr.mxu0 0.0
    %765 = vmatpush1.msra.mxu0 0.0
    %766 = vmatprep.subr.mxu0 0.0
    %767 = vmatpush1.msra.mxu0 0.0
    %768 = vmatprep.subr.mxu0 0.0
    %769 = vmatpush1.msra.mxu0 0.0
    %770 = vmatprep.subr.mxu0 0.0
    %771 = vmatpush1.msra.mxu0 0.0
    %772 = vmatprep.subr.mxu0 0.0
    %773 = vmatpush1.msra.mxu0 0.0
    %774 = vmatprep.subr.mxu0 0.0
    %775 = vmatpush1.msra.mxu0 0.0
    %776 = vmatprep.subr.mxu0 0.0
    %777 = vmatpush1.msra.mxu0 0.0
    %778 = vmatprep.subr.mxu0 0.0
    %779 = vmatpush1.msra.mxu0 0.0
    %780 = vmatprep.subr.mxu0 0.0
    %781 = vmatpush1.msra.mxu0 0.0
    %782 = vmatprep.mubr.f32.mxu0 0.0
    %783 = vmatmul.mubr.f32.gmra.mrb[0].mxu0 %v529
    %v784 = vpop.f32.mrb[0].mxu0
    %v785 = vadd.f32 %v467, %v784
    %v786 = vpop.f32.mrb[0].mxu0
    %v787 = vadd.f32 %v471, %v786
    %788 = vmatprep.mubr.f32.mxu0 0.0
    %789 = vmatmul.mubr.f32.gmra.mrb[0].mxu0 %v532
    %v790 = vpop.f32.mrb[0].mxu0
    %v791 = vadd.f32 %v467, %v790
    %v792 = vpop.f32.mrb[0].mxu0
    %v793 = vadd.f32 %v471, %v792
    %794 = vmatprep.mubr.f32.mxu0 0.0
    %795 = vmatmul.mubr.f32.gmra.mrb[0].mxu0 %v535
    %v796 = vpop.f32.mrb[0].mxu0
    %v797 = vadd.f32 %v467, %v796
    %v798 = vpop.f32.mrb[0].mxu0
    %v799 = vadd.f32 %v471, %v798
    %800 = vmatprep.mubr.f32.mxu0 0.0
    %801 = vmatmul.mubr.f32.gmra.mrb[0].mxu0 %v538
    %v802 = vpop.f32.mrb[0].mxu0
    %v803 = vadd.f32 %v467, %v802
    %v804 = vpop.f32.mrb[0].mxu0
    %v805 = vadd.f32 %v471, %v804
    %806 = vdwg.mxu0
    %807 = vmatprep.subr.mxu0 %v323
    %808 = vmatpush1.msra.mxu0 %v322
    %809 = vmatprep.subr.mxu0 %v339
    %810 = vmatpush1.msra.mxu0 %v338
    %811 = vmatprep.subr.mxu0 %v355
    %812 = vmatpush1.msra.mxu0 %v354
    %813 = vmatprep.subr.mxu0 %v371
    %814 = vmatpush1.msra.mxu0 %v370
    %815 = vmatprep.subr.mxu0 %v387
    %816 = vmatpush1.msra.mxu0 %v386
    %817 = vmatprep.subr.mxu0 %v403
    %818 = vmatpush1.msra.mxu0 %v402
    %819 = vmatprep.subr.mxu0 %v419
    %820 = vmatpush1.msra.mxu0 %v418
    %821 = vmatprep.subr.mxu0 %v435
    %822 = vmatpush1.msra.mxu0 %v434
    %823 = vmatprep.subr.mxu0 0.0
    %824 = vmatpush1.msra.mxu0 0.0
    %825 = vmatprep.subr.mxu0 0.0
    %826 = vmatpush1.msra.mxu0 0.0
    %827 = vmatprep.subr.mxu0 0.0
    %828 = vmatpush1.msra.mxu0 0.0
    %829 = vmatprep.subr.mxu0 0.0
    %830 = vmatpush1.msra.mxu0 0.0
    %831 = vmatprep.subr.mxu0 0.0
    %832 = vmatpush1.msra.mxu0 0.0
    %833 = vmatprep.subr.mxu0 0.0
    %834 = vmatpush1.msra.mxu0 0.0
    %835 = vmatprep.subr.mxu0 0.0
    %836 = vmatpush1.msra.mxu0 0.0
    %837 = vmatprep.subr.mxu0 0.0
    %838 = vmatpush1.msra.mxu0 0.0
    %839 = vmatprep.subr.mxu0 0.0
    %840 = vmatpush1.msra.mxu0 0.0
    %841 = vmatprep.subr.mxu0 0.0
    %842 = vmatpush1.msra.mxu0 0.0
    %843 = vmatprep.subr.mxu0 0.0
    %844 = vmatpush1.msra.mxu0 0.0
    %845 = vmatprep.subr.mxu0 0.0
    %846 = vmatpush1.msra.mxu0 0.0
    %847 = vmatprep.subr.mxu0 0.0
    %848 = vmatpush1.msra.mxu0 0.0
    %849 = vmatprep.subr.mxu0 0.0
    %850 = vmatpush1.msra.mxu0 0.0
    %851 = vmatprep.subr.mxu0 0.0
    %852 = vmatpush1.msra.mxu0 0.0
    %853 = vmatprep.subr.mxu0 0.0
    %854 = vmatpush1.msra.mxu0 0.0
    %855 = vmatprep.subr.mxu0 0.0
    %856 = vmatpush1.msra.mxu0 0.0
    %857 = vmatprep.subr.mxu0 0.0
    %858 = vmatpush1.msra.mxu0 0.0
    %859 = vmatprep.subr.mxu0 0.0
    %860 = vmatpush1.msra.mxu0 0.0
    %861 = vmatprep.subr.mxu0 0.0
    %862 = vmatpush1.msra.mxu0 0.0
    %863 = vmatprep.subr.mxu0 0.0
    %864 = vmatpush1.msra.mxu0 0.0
    %865 = vmatprep.subr.mxu0 0.0
    %866 = vmatpush1.msra.mxu0 0.0
    %867 = vmatprep.subr.mxu0 0.0
    %868 = vmatpush1.msra.mxu0 0.0
    %869 = vmatprep.subr.mxu0 0.0
    %870 = vmatpush1.msra.mxu0 0.0
    %871 = vmatprep.mubr.f32.mxu0 0.0
    %872 = vmatmul.mubr.f32.gmra.mrb[0].mxu0 %v529
    %v873 = vpop.f32.mrb[0].mxu0
    %v874 = vadd.f32 %v475, %v873
    %v875 = vpop.f32.mrb[0].mxu0
    %v876 = vadd.f32 %v479, %v875
    %877 = vmatprep.mubr.f32.mxu0 0.0
    %878 = vmatmul.mubr.f32.gmra.mrb[0].mxu0 %v532
    %v879 = vpop.f32.mrb[0].mxu0
    %v880 = vadd.f32 %v475, %v879
    %v881 = vpop.f32.mrb[0].mxu0
    %v882 = vadd.f32 %v479, %v881
    %883 = vmatprep.mubr.f32.mxu0 0.0
    %884 = vmatmul.mubr.f32.gmra.mrb[0].mxu0 %v535
    %v885 = vpop.f32.mrb[0].mxu0
    %v886 = vadd.f32 %v475, %v885
    %v887 = vpop.f32.mrb[0].mxu0
    %v888 = vadd.f32 %v479, %v887
    %889 = vmatprep.mubr.f32.mxu0 0.0
    %890 = vmatmul.mubr.f32.gmra.mrb[0].mxu0 %v538
    %v891 = vpop.f32.mrb[0].mxu0
    %v892 = vadd.f32 %v475, %v891
    %v893 = vpop.f32.mrb[0].mxu0
    %v894 = vadd.f32 %v479, %v893
    %895 = vdwg.mxu0
    %896 = vmatprep.subr.mxu0 %v325
    %897 = vmatpush1.msra.mxu0 %v324
    %898 = vmatprep.subr.mxu0 %v341
    %899 = vmatpush1.msra.mxu0 %v340
    %900 = vmatprep.subr.mxu0 %v357
    %901 = vmatpush1.msra.mxu0 %v356
    %902 = vmatprep.subr.mxu0 %v373
    %903 = vmatpush1.msra.mxu0 %v372
    %904 = vmatprep.subr.mxu0 %v389
    %905 = vmatpush1.msra.mxu0 %v388
    %906 = vmatprep.subr.mxu0 %v405
    %907 = vmatpush1.msra.mxu0 %v404
    %908 = vmatprep.subr.mxu0 %v421
    %909 = vmatpush1.msra.mxu0 %v420
    %910 = vmatprep.subr.mxu0 %v437
    %911 = vmatpush1.msra.mxu0 %v436
    %912 = vmatprep.subr.mxu0 0.0
    %913 = vmatpush1.msra.mxu0 0.0
    %914 = vmatprep.subr.mxu0 0.0
    %915 = vmatpush1.msra.mxu0 0.0
    %916 = vmatprep.subr.mxu0 0.0
    %917 = vmatpush1.msra.mxu0 0.0
    %918 = vmatprep.subr.mxu0 0.0
    %919 = vmatpush1.msra.mxu0 0.0
    %920 = vmatprep.subr.mxu0 0.0
    %921 = vmatpush1.msra.mxu0 0.0
    %922 = vmatprep.subr.mxu0 0.0
    %923 = vmatpush1.msra.mxu0 0.0
    %924 = vmatprep.subr.mxu0 0.0
    %925 = vmatpush1.msra.mxu0 0.0
    %926 = vmatprep.subr.mxu0 0.0
    %927 = vmatpush1.msra.mxu0 0.0
    %928 = vmatprep.subr.mxu0 0.0
    %929 = vmatpush1.msra.mxu0 0.0
    %930 = vmatprep.subr.mxu0 0.0
    %931 = vmatpush1.msra.mxu0 0.0
    %932 = vmatprep.subr.mxu0 0.0
    %933 = vmatpush1.msra.mxu0 0.0
    %934 = vmatprep.subr.mxu0 0.0
    %935 = vmatpush1.msra.mxu0 0.0
    %936 = vmatprep.subr.mxu0 0.0
    %937 = vmatpush1.msra.mxu0 0.0
    %938 = vmatprep.subr.mxu0 0.0
    %939 = vmatpush1.msra.mxu0 0.0
    %940 = vmatprep.subr.mxu0 0.0
    %941 = vmatpush1.msra.mxu0 0.0
    %942 = vmatprep.subr.mxu0 0.0
    %943 = vmatpush1.msra.mxu0 0.0
    %944 = vmatprep.subr.mxu0 0.0
    %945 = vmatpush1.msra.mxu0 0.0
    %946 = vmatprep.subr.mxu0 0.0
    %947 = vmatpush1.msra.mxu0 0.0
    %948 = vmatprep.subr.mxu0 0.0
    %949 = vmatpush1.msra.mxu0 0.0
    %950 = vmatprep.subr.mxu0 0.0
    %951 = vmatpush1.msra.mxu0 0.0
    %952 = vmatprep.subr.mxu0 0.0
    %953 = vmatpush1.msra.mxu0 0.0
    %954 = vmatprep.subr.mxu0 0.0
    %955 = vmatpush1.msra.mxu0 0.0
    %956 = vmatprep.subr.mxu0 0.0
    %957 = vmatpush1.msra.mxu0 0.0
    %958 = vmatprep.subr.mxu0 0.0
    %959 = vmatpush1.msra.mxu0 0.0
    %960 = vmatprep.mubr.f32.mxu0 0.0
    %961 = vmatmul.mubr.f32.gmra.mrb[0].mxu0 %v529
    %v962 = vpop.f32.mrb[0].mxu0
    %v963 = vadd.f32 %v483, %v962
    %v964 = vpop.f32.mrb[0].mxu0
    %v965 = vadd.f32 %v487, %v964
    %966 = vmatprep.mubr.f32.mxu0 0.0
    %967 = vmatmul.mubr.f32.gmra.mrb[0].mxu0 %v532
    %v968 = vpop.f32.mrb[0].mxu0
    %v969 = vadd.f32 %v483, %v968
    %v970 = vpop.f32.mrb[0].mxu0
    %v971 = vadd.f32 %v487, %v970
    %972 = vmatprep.mubr.f32.mxu0 0.0
    %973 = vmatmul.mubr.f32.gmra.mrb[0].mxu0 %v535
    %v974 = vpop.f32.mrb[0].mxu0
    %v975 = vadd.f32 %v483, %v974
    %v976 = vpop.f32.mrb[0].mxu0
    %v977 = vadd.f32 %v487, %v976
    %978 = vmatprep.mubr.f32.mxu0 0.0
    %979 = vmatmul.mubr.f32.gmra.mrb[0].mxu0 %v538
    %v980 = vpop.f32.mrb[0].mxu0
    %v981 = vadd.f32 %v483, %v980
    %v982 = vpop.f32.mrb[0].mxu0
    %v983 = vadd.f32 %v487, %v982
    %984 = vdwg.mxu0
    %985 = vmatprep.subr.mxu0 %v327
    %986 = vmatpush1.msra.mxu0 %v326
    %987 = vmatprep.subr.mxu0 %v343
    %988 = vmatpush1.msra.mxu0 %v342
    %989 = vmatprep.subr.mxu0 %v359
    %990 = vmatpush1.msra.mxu0 %v358
    %991 = vmatprep.subr.mxu0 %v375
    %992 = vmatpush1.msra.mxu0 %v374
    %993 = vmatprep.subr.mxu0 %v391
    %994 = vmatpush1.msra.mxu0 %v390
    %995 = vmatprep.subr.mxu0 %v407
    %996 = vmatpush1.msra.mxu0 %v406
    %997 = vmatprep.subr.mxu0 %v423
    %998 = vmatpush1.msra.mxu0 %v422
    %999 = vmatprep.subr.mxu0 %v439
    %1000 = vmatpush1.msra.mxu0 %v438
    %1001 = vmatprep.subr.mxu0 0.0
    %1002 = vmatpush1.msra.mxu0 0.0
    %1003 = vmatprep.subr.mxu0 0.0
    %1004 = vmatpush1.msra.mxu0 0.0
    %1005 = vmatprep.subr.mxu0 0.0
    %1006 = vmatpush1.msra.mxu0 0.0
    %1007 = vmatprep.subr.mxu0 0.0
    %1008 = vmatpush1.msra.mxu0 0.0
    %1009 = vmatprep.subr.mxu0 0.0
    %1010 = vmatpush1.msra.mxu0 0.0
    %1011 = vmatprep.subr.mxu0 0.0
    %1012 = vmatpush1.msra.mxu0 0.0
    %1013 = vmatprep.subr.mxu0 0.0
    %1014 = vmatpush1.msra.mxu0 0.0
    %1015 = vmatprep.subr.mxu0 0.0
    %1016 = vmatpush1.msra.mxu0 0.0
    %1017 = vmatprep.subr.mxu0 0.0
    %1018 = vmatpush1.msra.mxu0 0.0
    %1019 = vmatprep.subr.mxu0 0.0
    %1020 = vmatpush1.msra.mxu0 0.0
    %1021 = vmatprep.subr.mxu0 0.0
    %1022 = vmatpush1.msra.mxu0 0.0
    %1023 = vmatprep.subr.mxu0 0.0
    %1024 = vmatpush1.msra.mxu0 0.0
    %1025 = vmatprep.subr.mxu0 0.0
    %1026 = vmatpush1.msra.mxu0 0.0
    %1027 = vmatprep.subr.mxu0 0.0
    %1028 = vmatpush1.msra.mxu0 0.0
    %1029 = vmatprep.subr.mxu0 0.0
    %1030 = vmatpush1.msra.mxu0 0.0
    %1031 = vmatprep.subr.mxu0 0.0
    %1032 = vmatpush1.msra.mxu0 0.0
    %1033 = vmatprep.subr.mxu0 0.0
    %1034 = vmatpush1.msra.mxu0 0.0
    %1035 = vmatprep.subr.mxu0 0.0
    %1036 = vmatpush1.msra.mxu0 0.0
    %1037 = vmatprep.subr.mxu0 0.0
    %1038 = vmatpush1.msra.mxu0 0.0
    %1039 = vmatprep.subr.mxu0 0.0
    %1040 = vmatpush1.msra.mxu0 0.0
    %1041 = vmatprep.subr.mxu0 0.0
    %1042 = vmatpush1.msra.mxu0 0.0
    %1043 = vmatprep.subr.mxu0 0.0
    %1044 = vmatpush1.msra.mxu0 0.0
    %1045 = vmatprep.subr.mxu0 0.0
    %1046 = vmatpush1.msra.mxu0 0.0
    %1047 = vmatprep.subr.mxu0 0.0
    %1048 = vmatpush1.msra.mxu0 0.0
    %1049 = vmatprep.mubr.f32.mxu0 0.0
    %1050 = vmatmul.mubr.f32.gmra.mrb[0].mxu0 %v529
    %v1051 = vpop.f32.mrb[0].mxu0
    %v1052 = vadd.f32 %v491, %v1051
    %v1053 = vpop.f32.mrb[0].mxu0
    %v1054 = vadd.f32 %v495, %v1053
    %1055 = vmatprep.mubr.f32.mxu0 0.0
    %1056 = vmatmul.mubr.f32.gmra.mrb[0].mxu0 %v532
    %v1057 = vpop.f32.mrb[0].mxu0
    %v1058 = vadd.f32 %v491, %v1057
    %v1059 = vpop.f32.mrb[0].mxu0
    %v1060 = vadd.f32 %v495, %v1059
    %1061 = vmatprep.mubr.f32.mxu0 0.0
    %1062 = vmatmul.mubr.f32.gmra.mrb[0].mxu0 %v535
    %v1063 = vpop.f32.mrb[0].mxu0
    %v1064 = vadd.f32 %v491, %v1063
    %v1065 = vpop.f32.mrb[0].mxu0
    %v1066 = vadd.f32 %v495, %v1065
    %1067 = vmatprep.mubr.f32.mxu0 0.0
    %1068 = vmatmul.mubr.f32.gmra.mrb[0].mxu0 %v538
    %v1069 = vpop.f32.mrb[0].mxu0
    %v1070 = vadd.f32 %v491, %v1069
    %v1071 = vpop.f32.mrb[0].mxu0
    %v1072 = vadd.f32 %v495, %v1071
    %1073 = vdwg.mxu0
    %1074 = vmatprep.subr.mxu0 %v329
    %1075 = vmatpush1.msra.mxu0 %v328
    %1076 = vmatprep.subr.mxu0 %v345
    %1077 = vmatpush1.msra.mxu0 %v344
    %1078 = vmatprep.subr.mxu0 %v361
    %1079 = vmatpush1.msra.mxu0 %v360
    %1080 = vmatprep.subr.mxu0 %v377
    %1081 = vmatpush1.msra.mxu0 %v376
    %1082 = vmatprep.subr.mxu0 %v393
    %1083 = vmatpush1.msra.mxu0 %v392
    %1084 = vmatprep.subr.mxu0 %v409
    %1085 = vmatpush1.msra.mxu0 %v408
    %1086 = vmatprep.subr.mxu0 %v425
    %1087 = vmatpush1.msra.mxu0 %v424
    %1088 = vmatprep.subr.mxu0 %v441
    %1089 = vmatpush1.msra.mxu0 %v440
    %1090 = vmatprep.subr.mxu0 0.0
    %1091 = vmatpush1.msra.mxu0 0.0
    %1092 = vmatprep.subr.mxu0 0.0
    %1093 = vmatpush1.msra.mxu0 0.0
    %1094 = vmatprep.subr.mxu0 0.0
    %1095 = vmatpush1.msra.mxu0 0.0
    %1096 = vmatprep.subr.mxu0 0.0
    %1097 = vmatpush1.msra.mxu0 0.0
    %1098 = vmatprep.subr.mxu0 0.0
    %1099 = vmatpush1.msra.mxu0 0.0
    %1100 = vmatprep.subr.mxu0 0.0
    %1101 = vmatpush1.msra.mxu0 0.0
    %1102 = vmatprep.subr.mxu0 0.0
    %1103 = vmatpush1.msra.mxu0 0.0
    %1104 = vmatprep.subr.mxu0 0.0
    %1105 = vmatpush1.msra.mxu0 0.0
    %1106 = vmatprep.subr.mxu0 0.0
    %1107 = vmatpush1.msra.mxu0 0.0
    %1108 = vmatprep.subr.mxu0 0.0
    %1109 = vmatpush1.msra.mxu0 0.0
    %1110 = vmatprep.subr.mxu0 0.0
    %1111 = vmatpush1.msra.mxu0 0.0
    %1112 = vmatprep.subr.mxu0 0.0
    %1113 = vmatpush1.msra.mxu0 0.0
    %1114 = vmatprep.subr.mxu0 0.0
    %1115 = vmatpush1.msra.mxu0 0.0
    %1116 = vmatprep.subr.mxu0 0.0
    %1117 = vmatpush1.msra.mxu0 0.0
    %1118 = vmatprep.subr.mxu0 0.0
    %1119 = vmatpush1.msra.mxu0 0.0
    %1120 = vmatprep.subr.mxu0 0.0
    %1121 = vmatpush1.msra.mxu0 0.0
    %1122 = vmatprep.subr.mxu0 0.0
    %1123 = vmatpush1.msra.mxu0 0.0
    %1124 = vmatprep.subr.mxu0 0.0
    %1125 = vmatpush1.msra.mxu0 0.0
    %1126 = vmatprep.subr.mxu0 0.0
    %1127 = vmatpush1.msra.mxu0 0.0
    %1128 = vmatprep.subr.mxu0 0.0
    %1129 = vmatpush1.msra.mxu0 0.0
    %1130 = vmatprep.subr.mxu0 0.0
    %1131 = vmatpush1.msra.mxu0 0.0
    %1132 = vmatprep.subr.mxu0 0.0
    %1133 = vmatpush1.msra.mxu0 0.0
    %1134 = vmatprep.subr.mxu0 0.0
    %1135 = vmatpush1.msra.mxu0 0.0
    %1136 = vmatprep.subr.mxu0 0.0
    %1137 = vmatpush1.msra.mxu0 0.0
    %1138 = vmatprep.mubr.f32.mxu0 0.0
    %1139 = vmatmul.mubr.f32.gmra.mrb[0].mxu0 %v529
    %v1140 = vpop.f32.mrb[0].mxu0
    %v1141 = vadd.f32 %v499, %v1140
    %v1142 = vpop.f32.mrb[0].mxu0
    %v1143 = vadd.f32 %v503, %v1142
    %1144 = vmatprep.mubr.f32.mxu0 0.0
    %1145 = vmatmul.mubr.f32.gmra.mrb[0].mxu0 %v532
    %v1146 = vpop.f32.mrb[0].mxu0
    %v1147 = vadd.f32 %v499, %v1146
    %v1148 = vpop.f32.mrb[0].mxu0
    %v1149 = vadd.f32 %v503, %v1148
    %1150 = vmatprep.mubr.f32.mxu0 0.0
    %1151 = vmatmul.mubr.f32.gmra.mrb[0].mxu0 %v535
    %v1152 = vpop.f32.mrb[0].mxu0
    %v1153 = vadd.f32 %v499, %v1152
    %v1154 = vpop.f32.mrb[0].mxu0
    %v1155 = vadd.f32 %v503, %v1154
    %1156 = vmatprep.mubr.f32.mxu0 0.0
    %1157 = vmatmul.mubr.f32.gmra.mrb[0].mxu0 %v538
    %v1158 = vpop.f32.mrb[0].mxu0
    %v1159 = vadd.f32 %v499, %v1158
    %v1160 = vpop.f32.mrb[0].mxu0
    %v1161 = vadd.f32 %v503, %v1160
    %1162 = vdwg.mxu0
    %1163 = vmatprep.subr.mxu0 %v331
    %1164 = vmatpush1.msra.mxu0 %v330
    %1165 = vmatprep.subr.mxu0 %v347
    %1166 = vmatpush1.msra.mxu0 %v346
    %1167 = vmatprep.subr.mxu0 %v363
    %1168 = vmatpush1.msra.mxu0 %v362
    %1169 = vmatprep.subr.mxu0 %v379
    %1170 = vmatpush1.msra.mxu0 %v378
    %1171 = vmatprep.subr.mxu0 %v395
    %1172 = vmatpush1.msra.mxu0 %v394
    %1173 = vmatprep.subr.mxu0 %v411
    %1174 = vmatpush1.msra.mxu0 %v410
    %1175 = vmatprep.subr.mxu0 %v427
    %1176 = vmatpush1.msra.mxu0 %v426
    %1177 = vmatprep.subr.mxu0 %v443
    %1178 = vmatpush1.msra.mxu0 %v442
    %1179 = vmatprep.subr.mxu0 0.0
    %1180 = vmatpush1.msra.mxu0 0.0
    %1181 = vmatprep.subr.mxu0 0.0
    %1182 = vmatpush1.msra.mxu0 0.0
    %1183 = vmatprep.subr.mxu0 0.0
    %1184 = vmatpush1.msra.mxu0 0.0
    %1185 = vmatprep.subr.mxu0 0.0
    %1186 = vmatpush1.msra.mxu0 0.0
    %1187 = vmatprep.subr.mxu0 0.0
    %1188 = vmatpush1.msra.mxu0 0.0
    %1189 = vmatprep.subr.mxu0 0.0
    %1190 = vmatpush1.msra.mxu0 0.0
    %1191 = vmatprep.subr.mxu0 0.0
    %1192 = vmatpush1.msra.mxu0 0.0
    %1193 = vmatprep.subr.mxu0 0.0
    %1194 = vmatpush1.msra.mxu0 0.0
    %1195 = vmatprep.subr.mxu0 0.0
    %1196 = vmatpush1.msra.mxu0 0.0
    %1197 = vmatprep.subr.mxu0 0.0
    %1198 = vmatpush1.msra.mxu0 0.0
    %1199 = vmatprep.subr.mxu0 0.0
    %1200 = vmatpush1.msra.mxu0 0.0
    %1201 = vmatprep.subr.mxu0 0.0
    %1202 = vmatpush1.msra.mxu0 0.0
    %1203 = vmatprep.subr.mxu0 0.0
    %1204 = vmatpush1.msra.mxu0 0.0
    %1205 = vmatprep.subr.mxu0 0.0
    %1206 = vmatpush1.msra.mxu0 0.0
    %1207 = vmatprep.subr.mxu0 0.0
    %1208 = vmatpush1.msra.mxu0 0.0
    %1209 = vmatprep.subr.mxu0 0.0
    %1210 = vmatpush1.msra.mxu0 0.0
    %1211 = vmatprep.subr.mxu0 0.0
    %1212 = vmatpush1.msra.mxu0 0.0
    %1213 = vmatprep.subr.mxu0 0.0
    %1214 = vmatpush1.msra.mxu0 0.0
    %1215 = vmatprep.subr.mxu0 0.0
    %1216 = vmatpush1.msra.mxu0 0.0
    %1217 = vmatprep.subr.mxu0 0.0
    %1218 = vmatpush1.msra.mxu0 0.0
    %1219 = vmatprep.subr.mxu0 0.0
    %1220 = vmatpush1.msra.mxu0 0.0
    %1221 = vmatprep.subr.mxu0 0.0
    %1222 = vmatpush1.msra.mxu0 0.0
    %1223 = vmatprep.subr.mxu0 0.0
    %1224 = vmatpush1.msra.mxu0 0.0
    %1225 = vmatprep.subr.mxu0 0.0
    %1226 = vmatpush1.msra.mxu0 0.0
    %1227 = vmatprep.mubr.f32.mxu0 0.0
    %1228 = vmatmul.mubr.f32.gmra.mrb[0].mxu0 %v529
    %v1229 = vpop.f32.mrb[0].mxu0
    %v1230 = vadd.f32 %v507, %v1229
    %v1231 = vpop.f32.mrb[0].mxu0
    %v1232 = vadd.f32 %v511, %v1231
    %1233 = vmatprep.mubr.f32.mxu0 0.0
    %1234 = vmatmul.mubr.f32.gmra.mrb[0].mxu0 %v532
    %v1235 = vpop.f32.mrb[0].mxu0
    %v1236 = vadd.f32 %v507, %v1235
    %v1237 = vpop.f32.mrb[0].mxu0
    %v1238 = vadd.f32 %v511, %v1237
    %1239 = vmatprep.mubr.f32.mxu0 0.0
    %1240 = vmatmul.mubr.f32.gmra.mrb[0].mxu0 %v535
    %v1241 = vpop.f32.mrb[0].mxu0
    %v1242 = vadd.f32 %v507, %v1241
    %v1243 = vpop.f32.mrb[0].mxu0
    %v1244 = vadd.f32 %v511, %v1243
    %1245 = vmatprep.mubr.f32.mxu0 0.0
    %1246 = vmatmul.mubr.f32.gmra.mrb[0].mxu0 %v538
    %v1247 = vpop.f32.mrb[0].mxu0
    %v1248 = vadd.f32 %v507, %v1247
    %v1249 = vpop.f32.mrb[0].mxu0
    %v1250 = vadd.f32 %v511, %v1249
    %1251 = vdwg.mxu0
    %1252 = vst [vmem:[#allocation10] sm:$0xff] %v607
    %1253 = vst [vmem:[#allocation10 + $0x8] sm:$0xff] %v609
    %1254 = vst [vmem:[#allocation10 + $0x10] sm:$0xff] %v696
    %1255 = vst [vmem:[#allocation10 + $0x18] sm:$0xff] %v698
    %1256 = vst [vmem:[#allocation10 + $0x20] sm:$0xff] %v785
    %1257 = vst [vmem:[#allocation10 + $0x28] sm:$0xff] %v787
    %1258 = vst [vmem:[#allocation10 + $0x30] sm:$0xff] %v874
    %1259 = vst [vmem:[#allocation10 + $0x38] sm:$0xff] %v876
    %1260 = vst [vmem:[#allocation10 + $0x40] sm:$0xff] %v963
    %1261 = vst [vmem:[#allocation10 + $0x48] sm:$0xff] %v965
    %1262 = vst [vmem:[#allocation10 + $0x50] sm:$0xff] %v1052
    %1263 = vst [vmem:[#allocation10 + $0x58] sm:$0xff] %v1054
    %1264 = vst [vmem:[#allocation10 + $0x60] sm:$0xff] %v1141
    %1265 = vst [vmem:[#allocation10 + $0x68] sm:$0xff] %v1143
    %1266 = vst [vmem:[#allocation10 + $0x70] sm:$0xff] %v1230
    %vm1267 = vcmask 654336
    %1268 = vst.msk [vmem:[#allocation10 + $0x78] sm:$0xff] %vm1267, %v1232
    %1269 = vst [vmem:[#allocation10 + $0x80] sm:$0xff] %v613
    %1270 = vst [vmem:[#allocation10 + $0x88] sm:$0xff] %v615
    %1271 = vst [vmem:[#allocation10 + $0x90] sm:$0xff] %v702
    %1272 = vst [vmem:[#allocation10 + $0x98] sm:$0xff] %v704
    %1273 = vst [vmem:[#allocation10 + $0xa0] sm:$0xff] %v791
    %1274 = vst [vmem:[#allocation10 + $0xa8] sm:$0xff] %v793
    %1275 = vst [vmem:[#allocation10 + $0xb0] sm:$0xff] %v880
    %1276 = vst [vmem:[#allocation10 + $0xb8] sm:$0xff] %v882
    %1277 = vst [vmem:[#allocation10 + $0xc0] sm:$0xff] %v969
    %1278 = vst [vmem:[#allocation10 + $0xc8] sm:$0xff] %v971
    %1279 = vst [vmem:[#allocation10 + $0xd0] sm:$0xff] %v1058
    %1280 = vst [vmem:[#allocation10 + $0xd8] sm:$0xff] %v1060
    %1281 = vst [vmem:[#allocation10 + $0xe0] sm:$0xff] %v1147
    %1282 = vst [vmem:[#allocation10 + $0xe8] sm:$0xff] %v1149
    %1283 = vst [vmem:[#allocation10 + $0xf0] sm:$0xff] %v1236
    %1284 = vst.msk [vmem:[#allocation10 + $0xf8] sm:$0xff] %vm1267, %v1238
    %1285 = vst [vmem:[#allocation10 + $0x100] sm:$0xff] %v619
    %1286 = vst [vmem:[#allocation10 + $0x108] sm:$0xff] %v621
    %1287 = vst [vmem:[#allocation10 + $0x110] sm:$0xff] %v708
    %1288 = vst [vmem:[#allocation10 + $0x118] sm:$0xff] %v710
    %1289 = vst [vmem:[#allocation10 + $0x120] sm:$0xff] %v797
    %1290 = vst [vmem:[#allocation10 + $0x128] sm:$0xff] %v799
    %1291 = vst [vmem:[#allocation10 + $0x130] sm:$0xff] %v886
    %1292 = vst [vmem:[#allocation10 + $0x138] sm:$0xff] %v888
    %1293 = vst [vmem:[#allocation10 + $0x140] sm:$0xff] %v975
    %1294 = vst [vmem:[#allocation10 + $0x148] sm:$0xff] %v977
    %1295 = vst [vmem:[#allocation10 + $0x150] sm:$0xff] %v1064
    %1296 = vst [vmem:[#allocation10 + $0x158] sm:$0xff] %v1066
    %1297 = vst [vmem:[#allocation10 + $0x160] sm:$0xff] %v1153
    %1298 = vst [vmem:[#allocation10 + $0x168] sm:$0xff] %v1155
    %1299 = vst [vmem:[#allocation10 + $0x170] sm:$0xff] %v1242
    %1300 = vst.msk [vmem:[#allocation10 + $0x178] sm:$0xff] %vm1267, %v1244
    %1301 = vst [vmem:[#allocation10 + $0x180] sm:$0xff] %v625
    %1302 = vst [vmem:[#allocation10 + $0x188] sm:$0xff] %v627
    %1303 = vst [vmem:[#allocation10 + $0x190] sm:$0xff] %v714
    %1304 = vst [vmem:[#allocation10 + $0x198] sm:$0xff] %v716
    %1305 = vst [vmem:[#allocation10 + $0x1a0] sm:$0xff] %v803
    %1306 = vst [vmem:[#allocation10 + $0x1a8] sm:$0xff] %v805
    %1307 = vst [vmem:[#allocation10 + $0x1b0] sm:$0xff] %v892
    %1308 = vst [vmem:[#allocation10 + $0x1b8] sm:$0xff] %v894
    %1309 = vst [vmem:[#allocation10 + $0x1c0] sm:$0xff] %v981
    %1310 = vst [vmem:[#allocation10 + $0x1c8] sm:$0xff] %v983
    %1311 = vst [vmem:[#allocation10 + $0x1d0] sm:$0xff] %v1070
    %1312 = vst [vmem:[#allocation10 + $0x1d8] sm:$0xff] %v1072
    %1313 = vst [vmem:[#allocation10 + $0x1e0] sm:$0xff] %v1159
    %1314 = vst [vmem:[#allocation10 + $0x1e8] sm:$0xff] %v1161
    %1315 = vst [vmem:[#allocation10 + $0x1f0] sm:$0xff] %v1248
    %1316 = vst.msk [vmem:[#allocation10 + $0x1f8] sm:$0xff] %vm1267, %v1250
    // Predicated region
    $region46: #{_decoder_mlp_padded.1} parent=1 // pred_check
      _
    $region47: #{_decoder_mlp_padded.1} parent=1 // pred_check_branch
      %1318 = sbr.rel (0) target = $region49
    $region48: #{_decoder_mlp_padded.1} parent=1 // pred_region
      %s1320 = ssub.s32 8192, 8192
      %1321 = vsyncadd [#allocation4], %s1320
      %s1322 = sshll.u32 [#allocation10], 4
      %s1323 = int_to_ptr.vmem [resolvable:$true] %s1322
      %1328 = dma.vmem_to_hbm [thread:$0]  %s1323, 8192, %s7, [#allocation4], 2048, 2048, 128
    $region49: #{_decoder_mlp_padded.1} parent=1 // pred_fallthru
      _
    // Predicated region
    $region50: #{_decoder_mlp_padded.1} parent=1 // pred_check
      _
    $region51: #{_decoder_mlp_padded.1} parent=1 // pred_check_branch
      %1330 = sbr.rel (0) target = $region53
    $region52: #{_decoder_mlp_padded.1} parent=1 // pred_region
      %1331 = dma.done [#allocation4], 8192
    $region53: #{_decoder_mlp_padded.1} parent=1 // pred_fallthru
      _
    %1332 = vsyncpa [#allocation3], 1
    %1333 = vsyncpa [#allocation6], 1
    %1334 = vsyncpa [#allocation9], 1
    %1335 = vsyncpa [#allocation4], 1

</llo_original>
